<compile_context>
chip_gen: v7x
topology: tpu7x:2x2x1
jax: 0.10.0
libtpu: 0.0.40
codegen_flags: <defaults>
</compile_context>

<pallas_src>
import functools

import jax
import jax.numpy as jnp
from jax.experimental import pallas as pl
from jax.experimental.pallas import tpu as pltpu


def _round_up(x, m):
    return ((x + m - 1) // m) * m


def _distill_bce_kernel(s_ref, t_ref, y_ref, out_ref, acc_ref, *,
                        inv_temperature, alpha, n_rows, tile_rows,
                        blocks_per_core, needs_mask):
    c = pl.program_id(0)   # core-split axis ("parallel")
    i = pl.program_id(1)   # per-core reduction steps ("arbitrary")

    @pl.when(i == 0)
    def _init():
        acc_ref[...] = jnp.zeros_like(acc_ref)

    s = s_ref[...].astype(jnp.float32)
    t = t_ref[...].astype(jnp.float32)
    y = y_ref[...].astype(jnp.float32)

    teacher_prob = jax.nn.sigmoid(t * inv_temperature)

    # log(sigmoid(s)) via a single stable softplus:
    #   log(sigmoid(s))     = -softplus(-s)
    #   log(1 - sigmoid(s)) = log(sigmoid(s)) - s
    abs_s = jnp.abs(s)
    softplus_neg_s = jnp.maximum(-s, 0.0) + jnp.log(1.0 + jnp.exp(-abs_s))
    log_p = -softplus_neg_s
    log_1mp = log_p - s
    # PyTorch nn.BCELoss clamps log terms at -100.
    log_p = jnp.maximum(log_p, -100.0)
    log_1mp = jnp.maximum(log_1mp, -100.0)

    # alpha*BCE(p, teacher) + (1-alpha)*BCE(p, y)
    #   == BCE(p, alpha*teacher + (1-alpha)*y)  elementwise (fixed alpha).
    tgt = alpha * teacher_prob + (1.0 - alpha) * y
    elem = -(tgt * log_p + (1.0 - tgt) * log_1mp)

    if needs_mask:
        # Zero contributions from rows past the real batch (tail padding and
        # fully-out-of-range duplicated blocks). Select, not multiply, so
        # garbage padding values (even NaN/inf) cannot leak through.
        block_idx = c * blocks_per_core + i
        row0 = block_idx * tile_rows
        rows = row0 + jax.lax.broadcasted_iota(jnp.int32, elem.shape, 0)
        elem = jnp.where(rows < n_rows, elem, 0.0)

    # Pure-VPU elementwise accumulation every step.
    acc_ref[...] += elem

    @pl.when(i == pl.num_programs(1) - 1)
    def _finalize():
        # Single expensive reduce per core, done once at the end.
        partial = jnp.sum(acc_ref[...], axis=1, keepdims=True)   # lane reduce
        partial = jnp.sum(partial, axis=0, keepdims=True)        # sublane reduce
        out_ref[...] = partial.reshape(1, 1, 1)


def distillation_bce_loss(student_logits, teacher_logits, target,
                          temperature=1.0, alpha=0.5,
                          target_block_bytes=2 * 1024 * 1024,
                          num_cores=2):
    assert student_logits.shape == teacher_logits.shape == target.shape
    if student_logits.ndim != 2:
        b = student_logits.shape[0]
        student_logits = student_logits.reshape(b, -1)
        teacher_logits = teacher_logits.reshape(b, -1)
        target = target.reshape(b, -1)
    B, F = student_logits.shape
    n_total = B * F

    # Tile sizing: ~target_block_bytes of f32 per input per grid step
    # (3 inputs x 2 pipeline buffers + accumulator stays well under the
    # 48 MiB VMEM limit requested below, safe even on v7x's 64 MiB VMEM).
    bytes_per_row = F * 4
    tile_rows = max(8, (target_block_bytes // bytes_per_row) // 8 * 8)
    tile_rows = min(tile_rows, _round_up(B, 8))

    num_blocks = pl.cdiv(B, tile_rows)
    blocks_per_core = pl.cdiv(num_blocks, num_cores)
    covered_rows = num_cores * blocks_per_core * tile_rows
    needs_mask = covered_rows != B
    last_block = num_blocks - 1

    def in_index_map(c, i):
        blk = c * blocks_per_core + i
        # Clamp so blocks past the array re-read the last valid block (their
        # contribution is masked to zero inside the kernel).
        return (jnp.minimum(blk, last_block), 0)

    kernel = functools.partial(
        _distill_bce_kernel,
        inv_temperature=1.0 / float(temperature),
        alpha=float(alpha),
        n_rows=B,
        tile_rows=tile_rows,
        blocks_per_core=blocks_per_core,
        needs_mask=needs_mask,
    )

    in_spec = pl.BlockSpec((tile_rows, F), in_index_map)

    partials = pl.pallas_call(
        kernel,
        out_shape=jax.ShapeDtypeStruct((num_cores, 1, 1), jnp.float32),
        grid_spec=pltpu.PrefetchScalarGridSpec(
            num_scalar_prefetch=0,
            grid=(num_cores, blocks_per_core),
            in_specs=[in_spec, in_spec, in_spec],
            out_specs=pl.BlockSpec((1, 1, 1), lambda c, i: (c, 0, 0)),
            scratch_shapes=[pltpu.VMEM((tile_rows, F), jnp.float32)],
        ),
        compiler_params=pltpu.CompilerParams(
            dimension_semantics=("parallel", "arbitrary"),
            vmem_limit_bytes=48 * 1024 * 1024,
        ),
    )(student_logits, teacher_logits, target)

    return jnp.sum(partials) / float(n_total)


def _reference(student_logits, teacher_logits, target, temperature, alpha):
    student_logits = student_logits.astype(jnp.float32)
    teacher_logits = teacher_logits.astype(jnp.float32)
    target = target.astype(jnp.float32)
    teacher_prob = jax.nn.sigmoid(teacher_logits / temperature)
    student_prob = jax.nn.sigmoid(student_logits)
    log_p = jnp.maximum(jnp.log(student_prob), -100.0)
    log_1mp = jnp.maximum(jnp.log(1.0 - student_prob), -100.0)
    dist = jnp.mean(-(teacher_prob * log_p + (1.0 - teacher_prob) * log_1mp))
    std = jnp.mean(-(target * log_p + (1.0 - target) * log_1mp))
    return alpha * dist + (1.0 - alpha) * std


if __name__ == "__main__":
    key = jax.random.PRNGKey(0)

    # Test 1: small "logits" shape (16 samples, 128 labels each).
    k1, k2, k3, k4, k5, k6 = jax.random.split(key, 6)
    B, F = 16, 128
    temperature, alpha = 2.0, 0.5
    student = jax.random.normal(k1, (B, F), dtype=jnp.float32)
    teacher = jax.random.normal(k2, (B, F), dtype=jnp.float32)
    tgt = jax.random.bernoulli(k3, 0.5, (B, F)).astype(jnp.float32)

    loss = distillation_bce_loss(student, teacher, tgt,
                                 temperature=temperature, alpha=alpha)
    loss = jax.block_until_ready(loss)
    ref = _reference(student, teacher, tgt, temperature, alpha)
    assert jnp.allclose(loss, ref, rtol=1e-5, atol=1e-5), (loss, ref)

    # Test 2: non-divisible batch + lane-odd feature dim + forced multi-block
    # grid (exercises tail masking, clamped index map, per-core partials).
    B2, F2 = 20, 96
    student2 = jax.random.normal(k4, (B2, F2), dtype=jnp.float32)
    teacher2 = jax.random.normal(k5, (B2, F2), dtype=jnp.float32)
    tgt2 = jax.random.bernoulli(k6, 0.5, (B2, F2)).astype(jnp.float32)

    loss2 = distillation_bce_loss(student2, teacher2, tgt2,
                                  temperature=1.5, alpha=0.3,
                                  target_block_bytes=4096)
    loss2 = jax.block_until_ready(loss2)
    ref2 = _reference(student2, teacher2, tgt2, 1.5, 0.3)
    assert jnp.allclose(loss2, ref2, rtol=1e-5, atol=1e-5), (loss2, ref2)

    print("KERNEL_OK")
</pallas_src>

<mosaic_0001>
module attributes {stable_mosaic.version = 11 : i64} {
  func.func @_distill_bce_kernel(%arg0: i32, %arg1: i32, %arg2: memref<16x128xf32, #tpu.memory_space<vmem>>, %arg3: memref<16x128xf32, #tpu.memory_space<vmem>>, %arg4: memref<16x128xf32, #tpu.memory_space<vmem>>, %arg5: memref<1x1x1xf32, #tpu.memory_space<vmem>>, %arg6: memref<16x128xf32, #tpu.memory_space<vmem>>) attributes {dimension_semantics = [#tpu.dimension_semantics<parallel>, #tpu.dimension_semantics<arbitrary>], iteration_bounds = array<i64: 2, 1>, scalar_prefetch = 0 : i64, scratch_operands = 1 : i64, tpu.core_type = #tpu.core_type<tc>, window_params = [{transform_indices = @transform_0, window_bounds = array<i64: 16, 128>}, {transform_indices = @transform_1, window_bounds = array<i64: 16, 128>}, {transform_indices = @transform_2, window_bounds = array<i64: 16, 128>}, {transform_indices = @transform_3, window_bounds = array<i64: 1, 1, 1>}]} {
    %c0_i32 = arith.constant 0 : i32
    %0 = arith.cmpi eq, %arg1, %c0_i32 : i32
    %1 = arith.extui %0 : i1 to i32
    %c0_i32_0 = arith.constant 0 : i32
    %2 = arith.cmpi ne, %1, %c0_i32_0 : i32
    scf.if %2 {
      %cst_26 = arith.constant 0.000000e+00 : f32
      %60 = vector.broadcast %cst_26 : f32 to vector<16x128xf32>
      %c0_27 = arith.constant 0 : index
      %c0_28 = arith.constant 0 : index
      %61 = vector.load %arg6[%c0_27, %c0_28] : memref<16x128xf32, #tpu.memory_space<vmem>>, vector<16x128xf32>
      tpu.vector_store %arg6[%c0_27, %c0_28], %60 {strides = array<i32>} : memref<16x128xf32, #tpu.memory_space<vmem>>, vector<16x128xf32>,
    } else {
    }
    %c0 = arith.constant 0 : index
    %c0_1 = arith.constant 0 : index
    %3 = vector.load %arg2[%c0, %c0_1] : memref<16x128xf32, #tpu.memory_space<vmem>>, vector<16x128xf32>
    %c0_2 = arith.constant 0 : index
    %c0_3 = arith.constant 0 : index
    %4 = vector.load %arg3[%c0_2, %c0_3] : memref<16x128xf32, #tpu.memory_space<vmem>>, vector<16x128xf32>
    %c0_4 = arith.constant 0 : index
    %c0_5 = arith.constant 0 : index
    %5 = vector.load %arg4[%c0_4, %c0_5] : memref<16x128xf32, #tpu.memory_space<vmem>>, vector<16x128xf32>
    %cst = arith.constant 5.000000e-01 : f32
    %6 = vector.broadcast %cst : f32 to vector<16x128xf32>
    %7 = arith.mulf %4, %6 : vector<16x128xf32>
    %8 = arith.negf %7 : vector<16x128xf32>
    %9 = math.exp %8 : vector<16x128xf32>
    %cst_6 = arith.constant 1.000000e+00 : f32
    %10 = vector.broadcast %cst_6 : f32 to vector<16x128xf32>
    %11 = arith.addf %10, %9 : vector<16x128xf32>
    %12 = arith.divf %10, %11 : vector<16x128xf32>
    %13 = math.absf %3 : vector<16x128xf32>
    %cst_7 = arith.constant 0.000000e+00 : f32
    %14 = vector.broadcast %cst_7 : f32 to vector<16x128xf32>
    %15 = arith.subf %14, %3 : vector<16x128xf32>
    %cst_8 = arith.constant 0.000000e+00 : f32
    %16 = vector.broadcast %cst_8 : f32 to vector<16x128xf32>
    %17 = arith.maximumf %15, %16 : vector<16x128xf32>
    %cst_9 = arith.constant 0.000000e+00 : f32
    %18 = vector.broadcast %cst_9 : f32 to vector<16x128xf32>
    %19 = arith.subf %18, %13 : vector<16x128xf32>
    %20 = math.exp %19 : vector<16x128xf32>
    %cst_10 = arith.constant 1.000000e+00 : f32
    %21 = vector.broadcast %cst_10 : f32 to vector<16x128xf32>
    %22 = arith.addf %21, %20 : vector<16x128xf32>
    %23 = math.log %22 : vector<16x128xf32>
    %24 = arith.addf %17, %23 : vector<16x128xf32>
    %cst_11 = arith.constant 0.000000e+00 : f32
    %25 = vector.broadcast %cst_11 : f32 to vector<16x128xf32>
    %26 = arith.subf %25, %24 : vector<16x128xf32>
    %27 = arith.subf %26, %3 : vector<16x128xf32>
    %cst_12 = arith.constant -1.000000e+02 : f32
    %28 = vector.broadcast %cst_12 : f32 to vector<16x128xf32>
    %29 = arith.maximumf %26, %28 : vector<16x128xf32>
    %cst_13 = arith.constant -1.000000e+02 : f32
    %30 = vector.broadcast %cst_13 : f32 to vector<16x128xf32>
    %31 = arith.maximumf %27, %30 : vector<16x128xf32>
    %cst_14 = arith.constant 5.000000e-01 : f32
    %32 = vector.broadcast %cst_14 : f32 to vector<16x128xf32>
    %33 = arith.mulf %32, %12 : vector<16x128xf32>
    %cst_15 = arith.constant 5.000000e-01 : f32
    %34 = vector.broadcast %cst_15 : f32 to vector<16x128xf32>
    %35 = arith.mulf %34, %5 : vector<16x128xf32>
    %36 = arith.addf %33, %35 : vector<16x128xf32>
    %37 = arith.mulf %36, %29 : vector<16x128xf32>
    %cst_16 = arith.constant 1.000000e+00 : f32
    %38 = vector.broadcast %cst_16 : f32 to vector<16x128xf32>
    %39 = arith.subf %38, %36 : vector<16x128xf32>
    %40 = arith.mulf %39, %31 : vector<16x128xf32>
    %41 = arith.addf %37, %40 : vector<16x128xf32>
    %cst_17 = arith.constant 0.000000e+00 : f32
    %42 = vector.broadcast %cst_17 : f32 to vector<16x128xf32>
    %43 = arith.subf %42, %41 : vector<16x128xf32>
    %c1_i32 = arith.constant 1 : i32
    %44 = arith.muli %arg0, %c1_i32 : i32
    %45 = arith.addi %44, %arg1 : i32
    %c16_i32 = arith.constant 16 : i32
    %46 = arith.muli %45, %c16_i32 : i32
    %47 = tpu.iota {dimensions = array<i32: 0>} : vector<16x128xi32>
    %48 = vector.broadcast %46 : i32 to vector<16x128xi32>
    %49 = arith.addi %48, %47 : vector<16x128xi32>
    %c16_i32_18 = arith.constant 16 : i32
    %50 = vector.broadcast %c16_i32_18 : i32 to vector<16x128xi32>
    %51 = arith.cmpi slt, %49, %50 : vector<16x128xi32>
    %cst_19 = arith.constant 0.000000e+00 : f32
    %52 = vector.broadcast %cst_19 : f32 to vector<16x128xf32>
    %53 = arith.select %51, %43, %52 : vector<16x128xi1>, vector<16x128xf32>
    %c0_20 = arith.constant 0 : index
    %c0_21 = arith.constant 0 : index
    %54 = vector.load %arg6[%c0_20, %c0_21] : memref<16x128xf32, #tpu.memory_space<vmem>>, vector<16x128xf32>
    %55 = arith.addf %54, %53 : vector<16x128xf32>
    %c0_22 = arith.constant 0 : index
    %c0_23 = arith.constant 0 : index
    %56 = vector.load %arg6[%c0_22, %c0_23] : memref<16x128xf32, #tpu.memory_space<vmem>>, vector<16x128xf32>
    tpu.vector_store %arg6[%c0_22, %c0_23], %55 {strides = array<i32>} : memref<16x128xf32, #tpu.memory_space<vmem>>, vector<16x128xf32>,
    %c0_i32_24 = arith.constant 0 : i32
    %57 = arith.cmpi eq, %arg1, %c0_i32_24 : i32
    %58 = arith.extui %57 : i1 to i32
    %c0_i32_25 = arith.constant 0 : i32
    %59 = arith.cmpi ne, %58, %c0_i32_25 : i32
    scf.if %59 {
      %c0_26 = arith.constant 0 : index
      %c0_27 = arith.constant 0 : index
      %60 = vector.load %arg6[%c0_26, %c0_27] : memref<16x128xf32, #tpu.memory_space<vmem>>, vector<16x128xf32>
      %cst_28 = arith.constant dense<0.000000e+00> : vector<16xf32>
      %61 = vector.multi_reduction <add>, %60, %cst_28 [1] : vector<16x128xf32> to vector<16xf32>
      %62 = vector.shape_cast %61 : vector<16xf32> to vector<16x1xf32>
      %cst_29 = arith.constant dense<0.000000e+00> : vector<1xf32>
      %63 = vector.multi_reduction <add>, %62, %cst_29 [0] : vector<16x1xf32> to vector<1xf32>
      %64 = vector.shape_cast %63 : vector<1xf32> to vector<1x1xf32>
      %65 = vector.shape_cast %64 : vector<1x1xf32> to vector<1x1x1xf32>
      %c0_30 = arith.constant 0 : index
      %c0_31 = arith.constant 0 : index
      %c0_32 = arith.constant 0 : index
      %66 = vector.load %arg5[%c0_30, %c0_31, %c0_32] : memref<1x1x1xf32, #tpu.memory_space<vmem>>, vector<1x1x1xf32>
      tpu.vector_store %arg5[%c0_30, %c0_31, %c0_32], %65 {strides = array<i32>} : memref<1x1x1xf32, #tpu.memory_space<vmem>>, vector<1x1x1xf32>,
    } else {
    }
    return
  }
  func.func @transform_0(%arg0: i32, %arg1: i32) -> (i32, i32) {
    %c1_i32 = arith.constant 1 : i32
    %0 = arith.muli %arg0, %c1_i32 : i32
    %1 = arith.addi %0, %arg1 : i32
    %c0_i32 = arith.constant 0 : i32
    %2 = arith.minsi %1, %c0_i32 : i32
    %c0_i32_0 = arith.constant 0 : i32
    %c0_i32_1 = arith.constant 0 : i32
    return %2, %c0_i32_0 : i32, i32
  }
  func.func @transform_1(%arg0: i32, %arg1: i32) -> (i32, i32) {
    %c1_i32 = arith.constant 1 : i32
    %0 = arith.muli %arg0, %c1_i32 : i32
    %1 = arith.addi %0, %arg1 : i32
    %c0_i32 = arith.constant 0 : i32
    %2 = arith.minsi %1, %c0_i32 : i32
    %c0_i32_0 = arith.constant 0 : i32
    %c0_i32_1 = arith.constant 0 : i32
    return %2, %c0_i32_0 : i32, i32
  }
  func.func @transform_2(%arg0: i32, %arg1: i32) -> (i32, i32) {
    %c1_i32 = arith.constant 1 : i32
    %0 = arith.muli %arg0, %c1_i32 : i32
    %1 = arith.addi %0, %arg1 : i32
    %c0_i32 = arith.constant 0 : i32
    %2 = arith.minsi %1, %c0_i32 : i32
    %c0_i32_0 = arith.constant 0 : i32
    %c0_i32_1 = arith.constant 0 : i32
    return %2, %c0_i32_0 : i32, i32
  }
  func.func @transform_3(%arg0: i32, %arg1: i32) -> (i32, i32, i32) {
    %c0_i32 = arith.constant 0 : i32
    %c0_i32_0 = arith.constant 0 : i32
    %c0_i32_1 = arith.constant 0 : i32
    return %arg0, %c0_i32, %c0_i32_0 : i32, i32, i32
  }
}

</mosaic_0001>

<llo_original>
// kernel: tpu_custom_call.1
$region0: #{tpu_custom_call.1}
  #allocation0 [shape = 'u32[]', space=smem, size = 0x4, offset = 0x4, fixed_abs, tag = 'smem constant byte address 0x4 - core index']
  #allocation1 [shape = 'u32[144,128]{1,0:T(1,128)}', space=vmem, size = 0x12000, scoped, tag = 'internal scratch']
  #allocation2 [shape = 'f32[16,128]{1,0:T(8,128)}', space=vmem, size = 0x2000, scoped, tag = 'scratch operand']
  %s0 = inlined_call_operand.hbm [shape: f32[16,128], index: 0, kind: input, shape index: {}]
  %s1 = inlined_call_operand.hbm [shape: f32[16,128], index: 1, kind: input, shape index: {}]
  %s2 = inlined_call_operand.hbm [shape: f32[16,128], index: 2, kind: input, shape index: {}]
  %s3 = inlined_call_operand.vmem [shape: f32[2,1,1], index: 3, kind: output, shape index: {}]
  %s4 = sld [smem:[#allocation0]]
  $region65: #{tpu_custom_call.1} parent=0
    _
  %s6 = ssub.s32 1, %s4
  %s7 = scalar_select 0, %s6, %s4
  $region1: #{tpu_custom_call.1} parent=0
    #allocation3 [shape = 'u8[16384]{0}', space=vmem, size = 0x4000, scoped, tag = 'input window, operand 0']
    #allocation4 [shape = 's32[2]{0}', space=sflag, size = 0x8, scoped, tag = 'scoped memory for tpu_custom_call.1']
    #allocation5 [shape = 'u8[16384]{0}', space=vmem, size = 0x4000, scoped, tag = 'input window, operand 1']
    #allocation6 [shape = 's32[2]{0}', space=sflag, size = 0x8, scoped, tag = 'scoped memory for tpu_custom_call.1']
    #allocation7 [shape = 'u8[16384]{0}', space=vmem, size = 0x4000, scoped, tag = 'input window, operand 2']
    %8 = vsyncpa [#allocation4], 0
    %s9 = scalar_lea.sflag [#allocation4], 1
    %10 = vsyncpa %s9, 0
    %11 = vsyncpa [#allocation6], 0
    %s12 = scalar_lea.sflag [#allocation6], 1
    %13 = vsyncpa %s12, 0
    loop: start=0, step=1, limit=4
    $region2: #{tpu_custom_call.1} parent=1 // loop_pre_header
      _
    $region3: #{tpu_custom_call.1} parent=1 // loop_header
      %s15 = sphi 0, %s19
      %p16 = scmp.ge.s32.totalorder %s15, 4
      %s22 = sphi 0, %s34
      %s23 = sphi 0, %s30
      %s24 = sphi 0, %s22
      %s25 = sphi 0, %s23
      %s26 = sphi 0, %s24
      %s27 = sphi 0, %s25
      %s43 = sphi 0, %s45
      %s46 = sphi 0, %s43
      %s47 = sphi 0, %s46
      %s63 = sphi 0, %s47
      %s75 = sphi 0, %s77
      %s78 = sphi 0, %s75
      %s79 = sphi 0, %s78
      %s95 = sphi 0, %s79
      %s107 = sphi 0, %s109
      %s110 = sphi 0, %s107
      %s111 = sphi 0, %s110
      %s127 = sphi 0, %s111
      %s133 = sphi 0, %s135
      %s136 = sphi 0, %s133
      %s137 = sphi 0, %s136
      %s153 = sphi 0, %s137
    $region4: #{tpu_custom_call.1} parent=1 // loop_header_branch
      %18 = sbr.rel (%p16) target = $region8
    $region5: #{tpu_custom_call.1} parent=1 // loop_body
      %s20 = ssub.s32 %s15, 1
      %s21 = ssub.s32 %s15, 2
      %s28 = sadd.s32 1, %s23
      %p29 = scmp.ge.s32.totalorder %s28, 1
      %s30 = scalar_select %p29, 0, %s28
      %s31 = sadd.s32 1, %s22
      %s32 = scalar_select %p29, %s31, %s22
      %p33 = scmp.ge.s32.totalorder %s32, 2
      %s34 = scalar_select %p33, 0, %s32
      %s35 = sadd.s32 %s22, %s23
      %p36 = scmp.lt.s32.totalorder %s35, 0
      %s37 = scalar_select %p36, %s35, 0
      %s38 = sadd.s32 %s34, %s30
      %p39 = scmp.lt.s32.totalorder %s38, 0
      %s40 = scalar_select %p39, %s38, 0
      %s41 = ssub.s32 %s37, %s40
      %p42 = scmp.eq.s32.totalorder %s41, 0
      %s44 = sadd.s32 %s43, 1
      %s45 = scalar_select %p42, %s43, %s44
      %p48 = pneg %p42
      %p49 = scmp.eq.s32.totalorder %s15, 1
      %p50 = por %p48, %p49
      %p51 = scmp.ne.s32.totalorder %s43, %s46
      %p52 = scmp.eq.s32.totalorder %s15, 0
      %p53 = por %p51, %p52
      %p54 = scmp.ne.s32.totalorder %s43, %s46
      %p55 = scmp.eq.s32.totalorder %s20, 1
      %p56 = por %p54, %p55
      %p57 = scmp.ne.s32.totalorder %s46, %s47
      %p58 = scmp.eq.s32.totalorder %s20, 0
      %p59 = por %p57, %p58
      %p60 = scmp.ne.s32.totalorder %s46, %s47
      %p61 = scmp.eq.s32.totalorder %s21, 1
      %p62 = por %p60, %p61
      %p64 = scmp.ne.s32.totalorder %s47, %s63
      %p65 = scmp.eq.s32.totalorder %s21, 0
      %p66 = por %p64, %p65
      %s67 = sadd.s32 %s22, %s23
      %p68 = scmp.lt.s32.totalorder %s67, 0
      %s69 = scalar_select %p68, %s67, 0
      %s70 = sadd.s32 %s34, %s30
      %p71 = scmp.lt.s32.totalorder %s70, 0
      %s72 = scalar_select %p71, %s70, 0
      %s73 = ssub.s32 %s69, %s72
      %p74 = scmp.eq.s32.totalorder %s73, 0
      %s76 = sadd.s32 %s75, 1
      %s77 = scalar_select %p74, %s75, %s76
      %p80 = pneg %p74
      %p81 = scmp.eq.s32.totalorder %s15, 1
      %p82 = por %p80, %p81
      %p83 = scmp.ne.s32.totalorder %s75, %s78
      %p84 = scmp.eq.s32.totalorder %s15, 0
      %p85 = por %p83, %p84
      %p86 = scmp.ne.s32.totalorder %s75, %s78
      %p87 = scmp.eq.s32.totalorder %s20, 1
      %p88 = por %p86, %p87
      %p89 = scmp.ne.s32.totalorder %s78, %s79
      %p90 = scmp.eq.s32.totalorder %s20, 0
      %p91 = por %p89, %p90
      %p92 = scmp.ne.s32.totalorder %s78, %s79
      %p93 = scmp.eq.s32.totalorder %s21, 1
      %p94 = por %p92, %p93
      %p96 = scmp.ne.s32.totalorder %s79, %s95
      %p97 = scmp.eq.s32.totalorder %s21, 0
      %p98 = por %p96, %p97
      %s99 = sadd.s32 %s22, %s23
      %p100 = scmp.lt.s32.totalorder %s99, 0
      %s101 = scalar_select %p100, %s99, 0
      %s102 = sadd.s32 %s34, %s30
      %p103 = scmp.lt.s32.totalorder %s102, 0
      %s104 = scalar_select %p103, %s102, 0
      %s105 = ssub.s32 %s101, %s104
      %p106 = scmp.eq.s32.totalorder %s105, 0
      %s108 = sadd.s32 %s107, 1
      %s109 = scalar_select %p106, %s107, %s108
      %p112 = pneg %p106
      %p113 = scmp.eq.s32.totalorder %s15, 1
      %p114 = por %p112, %p113
      %p115 = scmp.ne.s32.totalorder %s107, %s110
      %p116 = scmp.eq.s32.totalorder %s15, 0
      %p117 = por %p115, %p116
      %p118 = scmp.ne.s32.totalorder %s107, %s110
      %p119 = scmp.eq.s32.totalorder %s20, 1
      %p120 = por %p118, %p119
      %p121 = scmp.ne.s32.totalorder %s110, %s111
      %p122 = scmp.eq.s32.totalorder %s20, 0
      %p123 = por %p121, %p122
      %p124 = scmp.ne.s32.totalorder %s110, %s111
      %p125 = scmp.eq.s32.totalorder %s21, 1
      %p126 = por %p124, %p125
      %p128 = scmp.ne.s32.totalorder %s111, %s127
      %p129 = scmp.eq.s32.totalorder %s21, 0
      %p130 = por %p128, %p129
      %s131 = ssub.s32 %s22, %s34
      %p132 = scmp.eq.s32.totalorder %s131, 0
      %s134 = sadd.s32 %s133, 1
      %s135 = scalar_select %p132, %s133, %s134
      %p138 = pneg %p132
      %p139 = scmp.eq.s32.totalorder %s15, 1
      %p140 = por %p138, %p139
      %p141 = scmp.ne.s32.totalorder %s133, %s136
      %p142 = scmp.eq.s32.totalorder %s15, 0
      %p143 = por %p141, %p142
      %p144 = scmp.ne.s32.totalorder %s133, %s136
      %p145 = scmp.eq.s32.totalorder %s20, 1
      %p146 = por %p144, %p145
      %p147 = scmp.ne.s32.totalorder %s136, %s137
      %p148 = scmp.eq.s32.totalorder %s20, 0
      %p149 = por %p147, %p148
      %p150 = scmp.ne.s32.totalorder %s136, %s137
      %p151 = scmp.eq.s32.totalorder %s21, 1
      %p152 = por %p150, %p151
      %p154 = scmp.ne.s32.totalorder %s137, %s153
      %p155 = scmp.eq.s32.totalorder %s21, 0
      %p156 = por %p154, %p155
      %p157 = scmp.le.s32.totalorder 1, %s15
      %p158 = scmp.lt.s32.totalorder %s15, 3
      %p159 = pnand %p157, %p158
      %p160 = pneg %p159
      // Predicated region
      $region9: #{tpu_custom_call.1} parent=5 // pred_check
        _
      $region10: #{tpu_custom_call.1} parent=5 // pred_check_branch
        %162 = sbr.rel (%p159) target = $region12
      $region11: #{tpu_custom_call.1} parent=5 // pred_region
        %s163 = ssub.s32 %s15, 1
      $region12: #{tpu_custom_call.1} parent=5 // pred_fallthru
        _
      %p164 = scmp.lt.s32.totalorder %s15, 2
      // Predicated region
      $region13: #{tpu_custom_call.1} parent=5 // pred_check
        %p165 = pneg %p164
      $region14: #{tpu_custom_call.1} parent=5 // pred_check_branch
        %167 = sbr.rel (%p165) target = $region16
      $region15: #{tpu_custom_call.1} parent=5 // pred_region
        // Predicated region
        $region17: #{tpu_custom_call.1} parent=15 // pred_check
          %p168 = pneg %p53
        $region18: #{tpu_custom_call.1} parent=15 // pred_check_branch
          %170 = sbr.rel (%p168) target = $region20
        $region19: #{tpu_custom_call.1} parent=15 // pred_region
          %s171 = sand.u32 %s43, 1
          %s172 = scalar_lea.sflag [#allocation4], %s171
          %s173 = sand.u32 %s43, 1
          %s174 = smul.addr %s173, 16
          %s175 = scalar_lea.vmem [#allocation3], %s174
          %s176 = sadd.s32 %s22, %s23
          %p177 = scmp.lt.s32.totalorder %s176, 0
          %s178 = scalar_select %p177, %s176, 0
          %s179 = smul.u32 2, %s178
          %s181 = ssub.s32 256, 256
          %182 = vsyncadd %s172, %s181
          %s183 = smul.addr %s179, 128
          %s184 = scalar_lea.hbm %s0, %s183
          %s185 = sshll.u32 %s175, 4
          %s186 = int_to_ptr.vmem [resolvable:$true] %s185
          %191 = dma.hbm_to_vmem [thread:$0]  %s184, 256, %s186, %s172, 128, 128, 8
        $region20: #{tpu_custom_call.1} parent=15 // pred_fallthru
          _
        // Predicated region
        $region21: #{tpu_custom_call.1} parent=15 // pred_check
          %p192 = pneg %p85
        $region22: #{tpu_custom_call.1} parent=15 // pred_check_branch
          %194 = sbr.rel (%p192) target = $region24
        $region23: #{tpu_custom_call.1} parent=15 // pred_region
          %s195 = sand.u32 %s15, 1
          %s196 = scalar_lea.sflag [#allocation6], %s195
          %s197 = sand.u32 %s75, 1
          %s198 = smul.addr %s197, 16
          %s199 = scalar_lea.vmem [#allocation5], %s198
          %s200 = sadd.s32 %s22, %s23
          %p201 = scmp.lt.s32.totalorder %s200, 0
          %s202 = scalar_select %p201, %s200, 0
          %s203 = smul.u32 2, %s202
          %s205 = ssub.s32 256, 256
          %206 = vsyncadd %s196, %s205
          %s207 = smul.addr %s203, 128
          %s208 = scalar_lea.hbm %s1, %s207
          %s209 = sshll.u32 %s199, 4
          %s210 = int_to_ptr.vmem [resolvable:$true] %s209
          %215 = dma.hbm_to_vmem [thread:$0]  %s208, 256, %s210, %s196, 128, 128, 8
        $region24: #{tpu_custom_call.1} parent=15 // pred_fallthru
          _
        // Predicated region
        $region25: #{tpu_custom_call.1} parent=15 // pred_check
          %p216 = pneg %p117
        $region26: #{tpu_custom_call.1} parent=15 // pred_check_branch
          %218 = sbr.rel (%p216) target = $region28
        $region27: #{tpu_custom_call.1} parent=15 // pred_region
          %s219 = sand.u32 %s15, 1
          %s220 = scalar_lea.sflag [#allocation6], %s219
          %s221 = sand.u32 %s107, 1
          %s222 = smul.addr %s221, 16
          %s223 = scalar_lea.vmem [#allocation7], %s222
          %s224 = sadd.s32 %s22, %s23
          %p225 = scmp.lt.s32.totalorder %s224, 0
          %s226 = scalar_select %p225, %s224, 0
          %s227 = smul.u32 2, %s226
          %s229 = ssub.s32 256, 256
          %230 = vsyncadd %s220, %s229
          %s231 = smul.addr %s227, 128
          %s232 = scalar_lea.hbm %s2, %s231
          %s233 = sshll.u32 %s223, 4
          %s234 = int_to_ptr.vmem [resolvable:$true] %s233
          %239 = dma.hbm_to_vmem [thread:$0]  %s232, 256, %s234, %s220, 128, 128, 8
        $region28: #{tpu_custom_call.1} parent=15 // pred_fallthru
          _
      $region16: #{tpu_custom_call.1} parent=5 // pred_fallthru
        _
      %p240 = scmp.le.s32.totalorder 1, %s15
      %p241 = scmp.lt.s32.totalorder %s15, 3
      %p242 = pnand %p240, %p241
      %p243 = pneg %p242
      // Predicated region
      $region29: #{tpu_custom_call.1} parent=5 // pred_check
        _
      $region30: #{tpu_custom_call.1} parent=5 // pred_check_branch
        %245 = sbr.rel (%p242) target = $region32
      $region31: #{tpu_custom_call.1} parent=5 // pred_region
        %s246 = ssub.s32 %s15, 1
        %s247 = sand.u32 %s46, 1
        %s248 = scalar_lea.sflag [#allocation4], %s247
        %s249 = sand.u32 %s46, 1
        %s250 = smul.addr %s249, 16
        %s251 = scalar_lea.vmem [#allocation3], %s250
        // Predicated region
        $region33: #{tpu_custom_call.1} parent=31 // pred_check
          %p252 = pneg %p59
        $region34: #{tpu_custom_call.1} parent=31 // pred_check_branch
          %254 = sbr.rel (%p252) target = $region36
        $region35: #{tpu_custom_call.1} parent=31 // pred_region
          %255 = dma.done %s248, 256
        $region36: #{tpu_custom_call.1} parent=31 // pred_fallthru
          _
        %s256 = sand.u32 %s20, 1
        %s257 = scalar_lea.sflag [#allocation6], %s256
        %s258 = sand.u32 %s78, 1
        %s259 = smul.addr %s258, 16
        %s260 = scalar_lea.vmem [#allocation5], %s259
        // Predicated region
        $region37: #{tpu_custom_call.1} parent=31 // pred_check
          %p261 = pneg %p91
        $region38: #{tpu_custom_call.1} parent=31 // pred_check_branch
          %263 = sbr.rel (%p261) target = $region40
        $region39: #{tpu_custom_call.1} parent=31 // pred_region
          %264 = dma.done %s257, 256
        $region40: #{tpu_custom_call.1} parent=31 // pred_fallthru
          _
        %s265 = sand.u32 %s20, 1
        %s266 = scalar_lea.sflag [#allocation6], %s265
        %s267 = sand.u32 %s110, 1
        %s268 = smul.addr %s267, 16
        %s269 = scalar_lea.vmem [#allocation7], %s268
        // Predicated region
        $region41: #{tpu_custom_call.1} parent=31 // pred_check
          %p270 = pneg %p123
        $region42: #{tpu_custom_call.1} parent=31 // pred_check_branch
          %272 = sbr.rel (%p270) target = $region44
        $region43: #{tpu_custom_call.1} parent=31 // pred_region
          %273 = dma.done %s266, 256
        $region44: #{tpu_custom_call.1} parent=31 // pred_fallthru
          _
        %s274 = sand.u32 %s46, 1
        %s275 = scalar_lea.sflag [#allocation4], %s274
        %s276 = sand.u32 %s46, 1
        %s277 = smul.addr %s276, 16
        %s278 = scalar_lea.vmem [#allocation3], %s277
        %p279 = pneg %p59
        %p280 = pneg %p56
        %s281 = sand.u32 %s20, 1
        %s282 = scalar_lea.sflag [#allocation6], %s281
        %s283 = sand.u32 %s78, 1
        %s284 = smul.addr %s283, 16
        %s285 = scalar_lea.vmem [#allocation5], %s284
        %p286 = pneg %p91
        %p287 = pneg %p88
        %s288 = sand.u32 %s20, 1
        %s289 = scalar_lea.sflag [#allocation6], %s288
        %s290 = sand.u32 %s110, 1
        %s291 = smul.addr %s290, 16
        %s292 = scalar_lea.vmem [#allocation7], %s291
        %p293 = pneg %p123
        %p294 = pneg %p120
        %p295 = pneg %p149
        %p296 = pneg %p146
        %p297 = scmp.lt.s32.totalorder %s24, 1
        %s298 = scalar_select %p297, %s24, 1
        %s299 = scalar_lea.vmem %s3, %s298
        %s300 = sadd.s32 %s24, %s25
        %p301 = scmp.lt.s32.totalorder %s300, 0
        %s302 = scalar_select %p301, %s300, 0
        %s303 = smul.u32 2, %s302
        %s304 = sadd.s32 %s24, %s25
        %p305 = scmp.lt.s32.totalorder %s304, 0
        %s306 = scalar_select %p305, %s304, 0
        %s307 = smul.u32 2, %s306
        %s308 = sadd.s32 %s24, %s25
        %p309 = scmp.lt.s32.totalorder %s308, 0
        %s310 = scalar_select %p309, %s308, 0
        %s311 = smul.u32 2, %s310
        %p312 = scmp.lt.s32.totalorder %s24, 1
        %s313 = scalar_select %p312, %s24, 1
        %s314 = scalar_lea.vmem %s3, %s313
        %p315 = scmp.eq.s32.totalorder %s25, 0
        // Predicated region
        $region45: #{tpu_custom_call.1} parent=31 // pred_check
          %p316 = pneg %p315
        $region46: #{tpu_custom_call.1} parent=31 // pred_check_branch
          %318 = sbr.rel (%p316) target = $region48
        $region47: #{tpu_custom_call.1} parent=31 // pred_region
          %319 = vst [vmem:[#allocation2] sm:$0xff] 0.0
          %320 = vst [vmem:[#allocation2 + $0x8] sm:$0xff] 0.0
        $region48: #{tpu_custom_call.1} parent=31 // pred_fallthru
          _
        %v321 = vld [vmem:[%s251] sm:$0xff]
        %v322 = vld [vmem:[%s251 + $0x8] sm:$0xff]
        %v323 = vld [vmem:[%s260] sm:$0xff]
        %v324 = vld [vmem:[%s260 + $0x8] sm:$0xff]
        %v325 = vld [vmem:[%s269] sm:$0xff]
        %v326 = vld [vmem:[%s269 + $0x8] sm:$0xff]
        %v327 = vmul.f32 %v323, 0.5
        %v328 = vmul.f32 %v324, 0.5
        %v329 = vxor.u32 %v327, 2147483648
        %v330 = vxor.u32 %v328, 2147483648
        %v331 = vmul.f32 %v329, 1.442695
        %v332 = vpow.pop %v331
        %v333 = vmul.f32 %v330, 1.442695
        %v334 = vpow.pop %v333
        %v335 = vadd.f32 %v332, 1.0
        %v336 = vadd.f32 %v334, 1.0
        %v337 = vrcp.pop %v335
        %v338 = vmul.f32 1.0, %v337
        %v339 = vrcp.pop %v336
        %v340 = vmul.f32 1.0, %v339
        %v341 = vand.u32 2147483647, %v321
        %v342 = vand.u32 2147483647, %v322
        %v343 = vsub.f32 0.0, %v321
        %v344 = vsub.f32 0.0, %v322
        %v345 = vmax.f32 %v343, 0.0
        %v346 = vmax.f32 %v344, 0.0
        %v347 = vsub.f32 0.0, %v341
        %v348 = vsub.f32 0.0, %v342
        %v349 = vmul.f32 %v347, 1.442695
        %v350 = vpow.pop %v349
        %v351 = vmul.f32 %v348, 1.442695
        %v352 = vpow.pop %v351
        %v353 = vadd.f32 %v350, 1.0
        %v354 = vadd.f32 %v352, 1.0
        %v355 = vlog2.pop %v353
        %v356 = vmul.f32 %v355, 0.6931472
        %v357 = vlog2.pop %v354
        %v358 = vmul.f32 %v357, 0.6931472
        %v359 = vadd.f32 %v345, %v356
        %v360 = vadd.f32 %v346, %v358
        %v361 = vsub.f32 0.0, %v359
        %v362 = vsub.f32 0.0, %v360
        %v363 = vsub.f32 %v361, %v321
        %v364 = vsub.f32 %v362, %v322
        %v365 = vmax.f32 %v361, -100.0
        %v366 = vmax.f32 %v362, -100.0
        %v367 = vmax.f32 %v363, -100.0
        %v368 = vmax.f32 %v364, -100.0
        %v369 = vmul.f32 %v338, 0.5
        %v370 = vmul.f32 %v340, 0.5
        %v371 = vmul.f32 %v325, 0.5
        %v372 = vmul.f32 %v326, 0.5
        %v373 = vadd.f32 %v369, %v371
        %v374 = vadd.f32 %v370, %v372
        %v375 = vmul.f32 %v373, %v365
        %v376 = vmul.f32 %v374, %v366
        %v377 = vsub.f32 1.0, %v373
        %v378 = vsub.f32 1.0, %v374
        %v379 = vmul.f32 %v377, %v367
        %v380 = vmul.f32 %v378, %v368
        %v381 = vadd.f32 %v375, %v379
        %v382 = vadd.f32 %v376, %v380
        %v383 = vsub.f32 0.0, %v381
        %v384 = vsub.f32 0.0, %v382
        %s385 = sadd.s32 %s24, %s25
        %s386 = smul.u32 %s385, 16
        %v387 = vlaneseq
        %v388 = vshrl.u32 %v387, 7
        %v389 = vadd.s32 %v388, 8
        %v390 = vstv %s386
        %v391 = vadd.s32 %v390, %v388
        %v392 = vadd.s32 %v390, %v389
        %vm393 = vcmp.lt.s32.totalorder %v391, 16
        %vm394 = vcmp.lt.s32.totalorder %v392, 16
        %v395 = vsel %vm393, %v383, 0.0
        %v396 = vsel %vm394, %v384, 0.0
        %v397 = vld [vmem:[#allocation2] sm:$0xff]
        %v398 = vld [vmem:[#allocation2 + $0x8] sm:$0xff]
        %v399 = vadd.f32 %v397, %v395
        %v400 = vadd.f32 %v398, %v396
        %401 = vst [vmem:[#allocation2] sm:$0xff] %v399
        %402 = vst [vmem:[#allocation2 + $0x8] sm:$0xff] %v400
        // Predicated region
        $region49: #{tpu_custom_call.1} parent=31 // pred_check
          %p403 = pneg %p315
        $region50: #{tpu_custom_call.1} parent=31 // pred_check_branch
          %405 = sbr.rel (%p403) target = $region52
        $region51: #{tpu_custom_call.1} parent=31 // pred_region
          %v406 = vld [vmem:[#allocation2] sm:$0xff]
          %v407 = vld [vmem:[#allocation2 + $0x8] sm:$0xff]
          %408 = vadd.xlane.f32.xlu0 %v406
          %v409 = vpop.xlane.xlu0 %408
          %410 = vadd.xlane.f32.xlu0 %v407
          %v411 = vpop.xlane.xlu0 %410
          %v412 = vadd.f32 %v409, %v411
          %v413 = vrot.slane %v412, 4
          %v414 = vadd.f32 %v412, %v413
          %v415 = vrot.slane %v414, 2
          %v416 = vadd.f32 %v414, %v415
          %v417 = vrot.slane %v416, 1
          %v418 = vadd.f32 %v416, %v417
          %vm419 = vcmask 0
          %420 = vst.msk [vmem:[%s314] sm:$0x1] %vm419, %v418
        $region52: #{tpu_custom_call.1} parent=31 // pred_fallthru
          _
        %p421 = scmp.lt.s32.totalorder %s24, 1
        %s422 = scalar_select %p421, %s24, 1
        %s423 = scalar_lea.vmem %s3, %s422
        // Predicated region
        $region53: #{tpu_custom_call.1} parent=31 // pred_check
          %p424 = pneg %p146
        $region54: #{tpu_custom_call.1} parent=31 // pred_check_branch
          %426 = sbr.rel (%p424) target = $region56
        $region55: #{tpu_custom_call.1} parent=31 // pred_region
          _
        $region56: #{tpu_custom_call.1} parent=31 // pred_fallthru
          _
      $region32: #{tpu_custom_call.1} parent=5 // pred_fallthru
        _
      %p427 = scmp.le.s32.totalorder 2, %s15
      // Predicated region
      $region57: #{tpu_custom_call.1} parent=5 // pred_check
        %p428 = pneg %p427
      $region58: #{tpu_custom_call.1} parent=5 // pred_check_branch
        %430 = sbr.rel (%p428) target = $region60
      $region59: #{tpu_custom_call.1} parent=5 // pred_region
        %s431 = ssub.s32 %s15, 2
        // Predicated region
        $region61: #{tpu_custom_call.1} parent=59 // pred_check
          %p432 = pneg %p152
        $region62: #{tpu_custom_call.1} parent=59 // pred_check_branch
          %434 = sbr.rel (%p432) target = $region64
        $region63: #{tpu_custom_call.1} parent=59 // pred_region
          %p435 = scmp.lt.s32.totalorder %s26, 1
          %s436 = scalar_select %p435, %s26, 1
          %s437 = scalar_lea.vmem %s3, %s436
        $region64: #{tpu_custom_call.1} parent=59 // pred_fallthru
          _
      $region60: #{tpu_custom_call.1} parent=5 // pred_fallthru
        _
    $region6: #{tpu_custom_call.1} parent=1 // loop_footer
      %s19 = sadd.s32 1, %s15
    $region7: #{tpu_custom_call.1} parent=1 // loop_footer_branch
      %14 = sbr.rel target = $region3
    $region8: #{tpu_custom_call.1} parent=1 // loop_exit
      _
    %438 = vsyncpa [#allocation4], 1
    %s439 = scalar_lea.sflag [#allocation4], 1
    %440 = vsyncpa %s439, 1
    %441 = vsyncpa [#allocation6], 1
    %s442 = scalar_lea.sflag [#allocation6], 1
    %443 = vsyncpa %s442, 1

</llo_original>
